<compile_context>
chip_gen: v7x
topology: tpu7x:2x2x1
jax: 0.10.0
libtpu: 0.0.40
codegen_flags: <defaults>
</compile_context>

<pallas_src>
import jax
import jax.numpy as jnp
from jax.experimental import pallas as pl
from jax.experimental.pallas import tpu as pltpu

EMBED_DIM = 46          # module default embed_dim
BN_EPS = 1e-5           # nn.BatchNorm2d default eps

_INV_STD = 1.0 / 0.225
_MIN_DEPTH, _MAX_DEPTH = 0.1, 100.0
_MIN_DISP = 1.0 / _MAX_DEPTH
_MAX_DISP = 1.0 / _MIN_DEPTH


# ---------------------------------------------------------------------------
# Generic tiled elementwise runner (lane-dense, pipelined, megacore-parallel)
# ---------------------------------------------------------------------------
def _run_elementwise(kernel, x, lane=512, max_rows=1024):
    flat = x.reshape(-1)
    n = flat.shape[0]
    rows = pl.cdiv(n, lane)
    total = rows * lane
    if total != n:                       # pad the <lane-sized remainder (cheap)
        flat = jnp.pad(flat, (0, total - n))
    x2 = flat.reshape(rows, lane)

    if rows > max_rows:
        block_rows = max_rows                               # multiple of 8
    elif rows >= 16:
        # v7x megacore: keep >= 2 parallel grid steps (half, rounded to sublanes).
        block_rows = ((rows + 1) // 2 + 7) // 8 * 8
    else:
        block_rows = rows                                   # full-extent block
    grid = (pl.cdiv(rows, block_rows),)

    out = pl.pallas_call(
        kernel,
        out_shape=jax.ShapeDtypeStruct((rows, lane), x.dtype),
        grid=grid,
        in_specs=[pl.BlockSpec((block_rows, lane), lambda i: (i, 0))],
        out_specs=pl.BlockSpec((block_rows, lane), lambda i: (i, 0)),
        compiler_params=pltpu.CompilerParams(dimension_semantics=("parallel",)),
    )(x2)

    out = out.reshape(-1)
    if total != n:
        out = out[:n]
    return out.reshape(x.shape)


# ---------------------------------------------------------------------------
# Kernel 1: input normalization  (x - 0.45) / 0.225   (elementwise)
# TODO(synk): in a full pipeline this should be fused into the encoder's first
# conv input instead of being a standalone HBM round trip.
# ---------------------------------------------------------------------------
def _normalize_kernel(x_ref, o_ref):
    o_ref[...] = (x_ref[...] - 0.45) * _INV_STD


def normalize_pallas(x):
    return _run_elementwise(_normalize_kernel, x)


# ---------------------------------------------------------------------------
# Kernel 2: fcconv = 1x1 Conv2d + folded BatchNorm2d (inference) + ELU
#           fused matmul in channel-major layout:
#             Y[cout_pad, T] = W_folded[cout_pad, cin] @ X[cin, T] + shift
#           where W_folded already carries the BN scale.
# ---------------------------------------------------------------------------
def _fcconv_kernel(x_ref, w_ref, shift_ref, o_ref):
    # x_ref: (1, Cin, T) f32; w_ref: (Cout_pad, Cin) bf16 (BN scale folded in);
    # shift_ref: (Cout_pad, 1) f32; o_ref: (1, Cout_pad, T) bf16.
    x = x_ref[0].astype(jnp.bfloat16)                                 # VPU cast under DMA
    y = jnp.dot(w_ref[...], x, preferred_element_type=jnp.float32)    # (Cout_pad, T) f32
    y = y + shift_ref[...]
    y = jnp.where(y > 0.0, y, jnp.expm1(y))                           # ELU(alpha=1), f32
    o_ref[0] = y.astype(o_ref.dtype)                                  # full padded block, unmasked stores


def init_fcconv_params(key, cin, cout):
    k1, k2, k3, k4, k5, k6 = jax.random.split(key, 6)
    return dict(
        w=0.05 * jax.random.normal(k1, (cin, cout), jnp.float32),   # conv weight (1x1)
        b=0.05 * jax.random.normal(k2, (cout,), jnp.float32),       # conv bias
        gamma=1.0 + 0.1 * jax.random.normal(k3, (cout,), jnp.float32),
        beta=0.1 * jax.random.normal(k4, (cout,), jnp.float32),
        mean=0.1 * jax.random.normal(k5, (cout,), jnp.float32),     # BN running_mean
        var=1.0 + 0.1 * jnp.abs(jax.random.normal(k6, (cout,), jnp.float32)),  # running_var
    )


def _fold_bn(p, eps=BN_EPS):
    scale = p["gamma"] / jnp.sqrt(p["var"] + eps)
    shift = p["beta"] + scale * (p["b"] - p["mean"])
    return scale, shift


def _pick_tile(hw, n, t_hw):
    t = hw if hw <= t_hw else t_hw            # full extent or multiple of 128
    # v7x megacore: keep >= 2 parallel grid steps when batch is tiny.
    if n * pl.cdiv(hw, t) < 2 and hw >= 256:
        t = pl.cdiv(pl.cdiv(hw, 2), 128) * 128
    return t


def fcconv_pallas(x_nchw, params, *, t_hw=8192, out_dtype=jnp.bfloat16):
    n, cin, h, w_sp = x_nchw.shape
    cout = params["w"].shape[1]
    cout_pad = max(8, ((cout + 7) // 8) * 8)
    hw = h * w_sp

    scale, shift = _fold_bn(params)
    pad = cout_pad - cout
    # Fold BN scale into the weights -> kernel epilogue is just add + ELU.
    w_folded = params["w"].T * scale[:, None]                          # (Cout, Cin) f32
    w_folded = jnp.pad(w_folded, ((0, pad), (0, 0))).astype(jnp.bfloat16)
    shift = jnp.pad(shift, (0, pad)).reshape(cout_pad, 1).astype(jnp.float32)

    x3 = x_nchw.reshape(n, cin, hw)          # channel-major already; no transpose, no cast pass

    t = _pick_tile(hw, n, t_hw)
    grid = (n, pl.cdiv(hw, t))

    out = pl.pallas_call(
        _fcconv_kernel,
        out_shape=jax.ShapeDtypeStruct((n, cout_pad, hw), out_dtype),
        grid=grid,
        in_specs=[
            pl.BlockSpec((1, cin, t), lambda b, j: (b, 0, j)),
            pl.BlockSpec((cout_pad, cin), lambda b, j: (0, 0)),
            pl.BlockSpec((cout_pad, 1), lambda b, j: (0, 0)),
        ],
        out_specs=pl.BlockSpec((1, cout_pad, t), lambda b, j: (b, 0, j)),
        compiler_params=pltpu.CompilerParams(
            dimension_semantics=("parallel", "parallel")),
    )(x3, w_folded, shift)

    # Channel slice in the wrapper (fuses into the consumer); contiguous reshape.
    return out[:, :cout, :].reshape(n, cout, h, w_sp)


def fcconv_ref(x_nchw, p, eps=BN_EPS, fold_bf16=False):
    scale = p["gamma"] / jnp.sqrt(p["var"] + eps)
    shift = p["beta"] + scale * (p["b"] - p["mean"])
    if fold_bf16:
        # Mirror the kernel: BN scale folded into bf16 weight, bf16 activation,
        # f32 accumulation, f32 add + ELU.
        wf = (p["w"].T * scale[:, None]).astype(jnp.bfloat16).astype(jnp.float32)  # (Cout, Cin)
        x = x_nchw.astype(jnp.bfloat16).astype(jnp.float32)
        y = jnp.einsum("nchw,dc->ndhw", x, wf,
                       precision=jax.lax.Precision.HIGHEST,
                       preferred_element_type=jnp.float32)
        y = y + shift[None, :, None, None]
    else:
        y = jnp.einsum("nchw,cd->ndhw", x_nchw, p["w"],
                       precision=jax.lax.Precision.HIGHEST,
                       preferred_element_type=jnp.float32)
        y = y + p["b"][None, :, None, None]
        y = (y - p["mean"][None, :, None, None]) * scale[None, :, None, None] \
            + p["beta"][None, :, None, None]
    return jnp.where(y > 0, y, jnp.expm1(y))


# ---------------------------------------------------------------------------
# Kernel 3: disp_to_depth (min_depth=0.1, max_depth=100.0), eval path:
#           module returns only scaled_disp, so the 1/scaled_disp depth branch
#           is intentionally not computed (it was discarded anyway).
# TODO(synk): in a full pipeline this affine would be folded into the decoder's
# final sigmoid instead of a standalone HBM round trip.
# ---------------------------------------------------------------------------
def _scaled_disp_kernel(d_ref, sd_ref):
    sd_ref[...] = _MIN_DISP + (_MAX_DISP - _MIN_DISP) * d_ref[...]


def disp_to_depth_pallas(disp):
    return _run_elementwise(_scaled_disp_kernel, disp)


# ---------------------------------------------------------------------------
# Partial DepthCMT_H.forward (defaults: start_layer=2, use_upconv=True, eval)
# ---------------------------------------------------------------------------
def depth_cmt_h_forward_pieces(x_img, layer1_feat, decoder_disp, upconv_params):
    x_norm = normalize_pallas(x_img)                 # x = (x - 0.45) / 0.225
    # TODO(synk): torchvision ResNet18 encoder (layer0/layer1/...) is an external
    # dependency not defined in the provided source; `layer1_feat` stands in for
    # layer1's 64-channel output that feeds self.upconv.
    out = fcconv_pallas(layer1_feat, upconv_params)  # self.upconv (fcconv 64 -> embed_dim)
    # TODO(synk): CMT_Layer and DepthDecoder are not defined in the provided source;
    # `decoder_disp` stands in for the decoder's scale-0 disparity output.
    scaled_disp = disp_to_depth_pallas(decoder_disp)  # self.scale_inv_depth(disp)[0]
    return x_norm, out, scaled_disp


if __name__ == "__main__":
    key = jax.random.PRNGKey(0)
    k_img, k_feat, k_disp, k_par = jax.random.split(key, 4)

    # PyTorch-style NCHW inputs, small shapes.
    x = jax.random.uniform(k_img, (2, 3, 16, 16), jnp.float32)               # RGB image
    feat1 = jax.random.normal(k_feat, (2, 64, 8, 8), jnp.float32)            # layer1 stand-in
    disp = jax.nn.sigmoid(jax.random.normal(k_disp, (2, 1, 16, 16), jnp.float32))  # decoder stand-in

    upconv_params = init_fcconv_params(k_par, 64, EMBED_DIM)

    x_norm, out, scaled_disp = depth_cmt_h_forward_pieces(x, feat1, disp, upconv_params)
    for v in (x_norm, out, scaled_disp):
        jax.block_until_ready(v)

    # correctness checks against plain-JAX references
    assert jnp.allclose(x_norm, (x - 0.45) / 0.225, atol=1e-5, rtol=1e-5)

    assert out.shape == (2, EMBED_DIM, 8, 8)
    assert out.dtype == jnp.bfloat16
    out_f32 = out.astype(jnp.float32)
    ref_bf16 = fcconv_ref(feat1, upconv_params, fold_bf16=True)   # same bf16 operands as kernel
    assert jnp.allclose(out_f32, ref_bf16, atol=2e-2, rtol=2e-2)
    ref_f32 = fcconv_ref(feat1, upconv_params, fold_bf16=False)   # full-f32 PyTorch semantics
    assert jnp.allclose(out_f32, ref_f32, atol=5e-2, rtol=5e-2)

    sd_ref = 1.0 / 100.0 + (1.0 / 0.1 - 1.0 / 100.0) * disp
    assert jnp.allclose(scaled_disp, sd_ref, atol=1e-5, rtol=1e-5)

    print("KERNEL_OK")
</pallas_src>

<mosaic_0001>
module attributes {stable_mosaic.version = 11 : i64} {
  func.func @_normalize_kernel(%arg0: i32, %arg1: memref<3x512xf32, #tpu.memory_space<vmem>>, %arg2: memref<3x512xf32, #tpu.memory_space<vmem>>) attributes {dimension_semantics = [#tpu.dimension_semantics<parallel>], iteration_bounds = array<i64: 1>, scalar_prefetch = 0 : i64, scratch_operands = 0 : i64, tpu.core_type = #tpu.core_type<tc>, window_params = [{transform_indices = @transform_0, window_bounds = array<i64: 3, 512>}, {transform_indices = @transform_1, window_bounds = array<i64: 3, 512>}]} {
    %c0 = arith.constant 0 : index
    %c0_0 = arith.constant 0 : index
    %0 = vector.load %arg1[%c0, %c0_0] : memref<3x512xf32, #tpu.memory_space<vmem>>, vector<3x512xf32>
    %cst = arith.constant 4.500000e-01 : f32
    %1 = vector.broadcast %cst : f32 to vector<3x512xf32>
    %2 = arith.subf %0, %1 : vector<3x512xf32>
    %cst_1 = arith.constant 4.44444466 : f32
    %3 = vector.broadcast %cst_1 : f32 to vector<3x512xf32>
    %4 = arith.mulf %2, %3 : vector<3x512xf32>
    %c0_2 = arith.constant 0 : index
    %c0_3 = arith.constant 0 : index
    %5 = vector.load %arg2[%c0_2, %c0_3] : memref<3x512xf32, #tpu.memory_space<vmem>>, vector<3x512xf32>
    tpu.vector_store %arg2[%c0_2, %c0_3], %4 {strides = array<i32>} : memref<3x512xf32, #tpu.memory_space<vmem>>, vector<3x512xf32>,
    return
  }
  func.func @transform_0(%arg0: i32) -> (i32, i32) {
    %c0_i32 = arith.constant 0 : i32
    %c0_i32_0 = arith.constant 0 : i32
    return %arg0, %c0_i32 : i32, i32
  }
  func.func @transform_1(%arg0: i32) -> (i32, i32) {
    %c0_i32 = arith.constant 0 : i32
    %c0_i32_0 = arith.constant 0 : i32
    return %arg0, %c0_i32 : i32, i32
  }
}

</mosaic_0001>

<llo_original>
// kernel: tpu_custom_call.1
$region0: #{tpu_custom_call.1}
  #allocation0 [shape = 'u32[]', space=smem, size = 0x4, offset = 0x4, fixed_abs, tag = 'smem constant byte address 0x4 - core index']
  #allocation1 [shape = 'u32[144,128]{1,0:T(1,128)}', space=vmem, size = 0x12000, scoped, tag = 'internal scratch']
  %s0 = inlined_call_operand.hbm [shape: f32[3,512], index: 0, kind: input, shape index: {}]
  %s1 = inlined_call_operand.hbm [shape: f32[3,512], index: 1, kind: output, shape index: {}]
  %s2 = sld [smem:[#allocation0]]
  $region18: #{tpu_custom_call.1} parent=0
    _
  %s4 = ssub.s32 1, %s2
  %s5 = scalar_select 0, %s4, %s2
  $region1: #{tpu_custom_call.1} parent=0
    #allocation2 [shape = 'u8[8192]{0}', space=vmem, size = 0x2000, scoped, tag = 'input window, operand 0, single buffered']
    #allocation3 [shape = 's32[1]{0}', space=sflag, size = 0x4, scoped, tag = 'scoped memory for tpu_custom_call.1']
    #allocation4 [shape = 's32[1]{0}', space=sflag, size = 0x4, scoped, tag = 'scoped memory for tpu_custom_call.1']
    #allocation5 [shape = 'u8[8192]{0}', space=vmem, size = 0x2000, scoped, tag = 'output window, operand 0, single buffered']
    %6 = vsyncpa [#allocation3], 0
    %7 = vsyncpa [#allocation4], 0
    // Predicated region
    $region2: #{tpu_custom_call.1} parent=1 // pred_check
      _
    $region3: #{tpu_custom_call.1} parent=1 // pred_check_branch
      %9 = sbr.rel (0) target = $region5
    $region4: #{tpu_custom_call.1} parent=1 // pred_region
      %s11 = ssub.s32 256, 256
      %12 = vsyncadd [#allocation3], %s11
      %s14 = sshll.u32 [#allocation2], 4
      %s15 = int_to_ptr.vmem [resolvable:$true] %s14
      %17 = dma.hbm_to_vmem [thread:$0]  %s0, 256, %s15, [#allocation3]
    $region5: #{tpu_custom_call.1} parent=1 // pred_fallthru
      _
    // Predicated region
    $region6: #{tpu_custom_call.1} parent=1 // pred_check
      _
    $region7: #{tpu_custom_call.1} parent=1 // pred_check_branch
      %19 = sbr.rel (0) target = $region9
    $region8: #{tpu_custom_call.1} parent=1 // pred_region
      %20 = dma.done [#allocation3], 256
    $region9: #{tpu_custom_call.1} parent=1 // pred_fallthru
      _
    %v21 = vld [vmem:[#allocation2] sm:$0x77]
    %v22 = vld [vmem:[#allocation2 + $0x8] sm:$0x77]
    %v23 = vsub.f32 %v21, 0.45
    %v24 = vsub.f32 %v22, 0.45
    %v25 = vmul.f32 %v23, 4.4444447
    %v26 = vmul.f32 %v24, 4.4444447
    %27 = vst [vmem:[#allocation5] sm:$0x77] %v25
    %28 = vst [vmem:[#allocation5 + $0x8] sm:$0x77] %v26
    // Predicated region
    $region10: #{tpu_custom_call.1} parent=1 // pred_check
      _
    $region11: #{tpu_custom_call.1} parent=1 // pred_check_branch
      %30 = sbr.rel (0) target = $region13
    $region12: #{tpu_custom_call.1} parent=1 // pred_region
      %s32 = ssub.s32 256, 256
      %33 = vsyncadd [#allocation4], %s32
      %s35 = sshll.u32 [#allocation5], 4
      %s36 = int_to_ptr.vmem [resolvable:$true] %s35
      %38 = dma.vmem_to_hbm [thread:$0]  %s36, 256, %s1, [#allocation4]
    $region13: #{tpu_custom_call.1} parent=1 // pred_fallthru
      _
    // Predicated region
    $region14: #{tpu_custom_call.1} parent=1 // pred_check
      _
    $region15: #{tpu_custom_call.1} parent=1 // pred_check_branch
      %40 = sbr.rel (0) target = $region17
    $region16: #{tpu_custom_call.1} parent=1 // pred_region
      %41 = dma.done [#allocation4], 256
    $region17: #{tpu_custom_call.1} parent=1 // pred_fallthru
      _
    %42 = vsyncpa [#allocation3], 1
    %43 = vsyncpa [#allocation4], 1

</llo_original>
